<compile_context>
chip_gen: v6e
topology: v6e:2x2x1
jax: 0.10.0
libtpu: 0.0.40
codegen_flags: <defaults>
</compile_context>

<pallas_src>
import math

import jax
import jax.numpy as jnp
from jax.experimental import pallas as pl
from jax.experimental.pallas import tpu as pltpu

_LANE = 128


# --------------------------------------------------------------------------- #
# Reference sinusoidal table (identical to the PyTorch __init__ buffer).
# --------------------------------------------------------------------------- #
def _build_pe_table(d_model: int, max_len: int = 100) -> jnp.ndarray:
    """Returns pe with shape (1, max_len, d_model), float32."""
    position = jnp.arange(0, max_len, dtype=jnp.float32)[:, None]          # (max_len, 1)
    div_term = jnp.exp(
        jnp.arange(0, d_model, 2, dtype=jnp.float32)
        * (-math.log(10000.0) / d_model)
    )                                                                        # (ceil(d/2),)
    angles = position * div_term                                             # (max_len, ceil(d/2))
    pe = jnp.zeros((max_len, d_model), dtype=jnp.float32)
    pe = pe.at[:, 0::2].set(jnp.sin(angles))
    pe = pe.at[:, 1::2].set(jnp.cos(angles[:, : d_model // 2]))
    return pe[None, :, :]


# --------------------------------------------------------------------------- #
# Kernel bodies (f32 accumulation, cast on store).
# --------------------------------------------------------------------------- #
def _make_add_kernel(tr: int, rows: int, pe_resident: bool):
    if pe_resident and tr == rows:
        # pe slab fully resident and single row tile: no slicing needed.
        def kernel(x_ref, pe_ref, o_ref):
            o_ref[...] = (x_ref[...].astype(jnp.float32) + pe_ref[...]).astype(o_ref.dtype)
    elif pe_resident:
        # pe slab fully resident; slice the current row tile out of it in-body.
        def kernel(x_ref, pe_ref, o_ref):
            r = pl.program_id(0)
            start = pl.multiple_of(r * tr, tr)
            pe_tile = pe_ref[:, pl.ds(start, tr), :]                    # (1, tr, C) f32
            o_ref[...] = (x_ref[...].astype(jnp.float32) + pe_tile).astype(o_ref.dtype)
    else:
        # pe streamed per row tile (only taken when pe itself is very large).
        def kernel(x_ref, pe_ref, o_ref):
            o_ref[...] = (x_ref[...].astype(jnp.float32)
                          + pe_ref[...].astype(jnp.float32)).astype(o_ref.dtype)
    return kernel


# --------------------------------------------------------------------------- #
# Tiling / VMEM-budget selection.
# --------------------------------------------------------------------------- #
def _vmem_capacity_bytes() -> int:
    try:
        return int(pltpu.get_tpu_info().vmem_capacity_bytes)
    except Exception:
        return 64 * 1024 * 1024          # conservative (v7x per-TC physical VMEM)


def _largest_divisor_tile(n: int, step: int, limit: int) -> int:
    """Largest t <= limit with t % step == 0 and n % t == 0 (0 if none)."""
    best = 0
    t = step
    while t <= limit:
        if n % t == 0:
            best = t
        t += step
    return best


def _choose_tiling(B: int, rows: int, cols: int, x_bytes: int, out_bytes: int):
    vmem_cap = _vmem_capacity_bytes()
    # ~1/16 of VMEM per x/out buffer: 4 MiB on v7x (64 MiB), 8 MiB on v5e/v6e (128 MiB).
    per_buf_target = max(2 * 1024 * 1024, vmem_cap // 16)
    max_bytes = max(x_bytes, out_bytes)
    sub = max(32 // x_bytes, 32 // out_bytes, 8)          # sublane multiple for narrowest dtype
    row_bytes = cols * max_bytes

    if rows * row_bytes <= per_buf_target:
        tr = rows
        # Fold batch elements into the block to amortize per-step overhead.
        bb = 1
        for cand in range(1, B + 1):
            if B % cand == 0 and cand * rows * row_bytes <= per_buf_target:
                bb = cand
    else:
        limit = max(sub, per_buf_target // row_bytes)
        tr = _largest_divisor_tile(rows, sub, min(rows, limit))
        if tr == 0:
            tr = rows                                     # full extent is always legal
        bb = 1

    num_r = rows // tr
    num_b = B // bb

    # v7x megacore: keep >= 2 steps along a "parallel" axis so both TCs get work.
    if num_r * num_b == 1:
        if B > 1:
            bb = max(d for d in range(1, B) if B % d == 0)
            num_b = B // bb
        else:
            half = _largest_divisor_tile(rows, sub, rows // 2)
            if half > 0:
                tr, num_r = half, rows // half

    return tr, bb, num_r, num_b, vmem_cap


# --------------------------------------------------------------------------- #
# Wrapper.
# --------------------------------------------------------------------------- #
def positional_encoding(x: jnp.ndarray, pe_full: jnp.ndarray, *, donate_x: bool = False) -> jnp.ndarray:
    """x: (B, S, D); pe_full: (1, max_len, D) float32. Returns x + pe[:, :S]."""
    B, S, D = x.shape
    max_len = pe_full.shape[1]
    assert S <= max_len, f"sequence length {S} exceeds max_len {max_len}"

    pe = pe_full[:, :S, :].astype(jnp.float32)            # keep pe f32 in HBM; add in f32 in-kernel
    out_dtype = jnp.promote_types(x.dtype, jnp.float32)   # matches torch fp32-buffer promotion

    # ---- choose a lane-dense 2D layout (rows x cols) for the last two dims ----
    if D % _LANE == 0:
        rows, cols, reshaped = S, D, False
        x2, pe2 = x, pe
    elif (S * D) % _LANE == 0:
        rows, cols, reshaped = (S * D) // _LANE, _LANE, True
        x2 = x.reshape(B, rows, cols)
        pe2 = pe.reshape(1, rows, cols)
    else:
        # TODO(synk): S*D not a multiple of 128 -> output stores stay lane-masked (vst.msk).
        rows, cols, reshaped = S, D, False
        x2, pe2 = x, pe

    x_bytes = jnp.dtype(x.dtype).itemsize
    out_bytes = jnp.dtype(out_dtype).itemsize
    tr, bb, num_r, num_b, vmem_cap = _choose_tiling(B, rows, cols, x_bytes, out_bytes)

    pe_bytes = rows * cols * 4
    pe_resident = pe_bytes <= 8 * 1024 * 1024             # <= max_len * d_model * 4, tiny in practice

    if pe_resident:
        pe_spec = pl.BlockSpec((1, rows, cols), lambda r, b: (0, 0, 0))   # fetched once, stays resident
    else:
        pe_spec = pl.BlockSpec((1, tr, cols), lambda r, b: (0, r, 0))     # constant in b -> reused per row tile

    kernel = _make_add_kernel(tr, rows, pe_resident)

    # VMEM budget: double-buffered x/out + pe, plus slack; cap at 3/4 of physical
    # (48 MiB on v7x, 96 MiB on v5e/v6e).
    x_buf = bb * tr * cols * x_bytes
    o_buf = bb * tr * cols * out_bytes
    working = 2 * (x_buf + o_buf) + (pe_bytes if pe_resident else 2 * tr * cols * 4)
    vmem_limit = int(min(max(working + 8 * 1024 * 1024, 32 * 1024 * 1024), (vmem_cap * 3) // 4))

    cost = pl.CostEstimate(
        flops=B * rows * cols,
        transcendentals=0,
        bytes_accessed=B * rows * cols * (x_bytes + out_bytes) + pe_bytes,
    )

    out = pl.pallas_call(
        kernel,
        out_shape=jax.ShapeDtypeStruct((B, rows, cols), out_dtype),
        grid_spec=pltpu.PrefetchScalarGridSpec(
            num_scalar_prefetch=0,
            grid=(num_r, num_b),
            in_specs=[
                pl.BlockSpec((bb, tr, cols), lambda r, b: (b, r, 0)),     # x
                pe_spec,                                                  # pe (broadcast over batch)
            ],
            out_specs=pl.BlockSpec((bb, tr, cols), lambda r, b: (b, r, 0)),
        ),
        compiler_params=pltpu.CompilerParams(
            dimension_semantics=("parallel", "parallel"),
            vmem_limit_bytes=vmem_limit,
        ),
        cost_estimate=cost,
        # Aliasing only applies when dtypes match (x already f32); callers must still donate x.
        input_output_aliases=({0: 0} if (donate_x and x.dtype == out_dtype) else {}),
    )(x2, pe2)

    return out.reshape(B, S, D) if reshaped else out


if __name__ == "__main__":
    B, S, D = 2, 8, 32
    max_len = 100

    key = jax.random.PRNGKey(0)
    x = jax.random.normal(key, (B, S, D), dtype=jnp.float32)

    pe_full = _build_pe_table(D, max_len)

    out = positional_encoding(x, pe_full)
    out = jax.block_until_ready(out)

    # reference check in plain JAX
    ref = x + pe_full[:, :S, :]
    assert out.shape == (B, S, D)
    assert out.dtype == ref.dtype
    assert jnp.allclose(out, ref, atol=1e-6), "mismatch vs reference"

    print("KERNEL_OK")
</pallas_src>

<mosaic_0001>
module attributes {stable_mosaic.version = 11 : i64} {
  func.func @kernel(%arg0: i32, %arg1: i32, %arg2: memref<1x2x128xf32, #tpu.memory_space<vmem>>, %arg3: memref<1x2x128xf32, #tpu.memory_space<vmem>>, %arg4: memref<1x2x128xf32, #tpu.memory_space<vmem>>) attributes {dimension_semantics = [#tpu.dimension_semantics<parallel>, #tpu.dimension_semantics<parallel>], iteration_bounds = array<i64: 1, 2>, scalar_prefetch = 0 : i64, scratch_operands = 0 : i64, tpu.core_type = #tpu.core_type<tc>, window_params = [{transform_indices = @transform_0, window_bounds = array<i64: 1, 2, 128>}, {pipeline_mode = #tpu.pipeline_mode<synchronous>, transform_indices = @transform_1, window_bounds = array<i64: 1, 2, 128>}, {transform_indices = @transform_2, window_bounds = array<i64: 1, 2, 128>}]} {
    %c0 = arith.constant 0 : index
    %c0_0 = arith.constant 0 : index
    %c0_1 = arith.constant 0 : index
    %0 = vector.load %arg2[%c0, %c0_0, %c0_1] : memref<1x2x128xf32, #tpu.memory_space<vmem>>, vector<1x2x128xf32>
    %c0_2 = arith.constant 0 : index
    %c0_3 = arith.constant 0 : index
    %c0_4 = arith.constant 0 : index
    %1 = vector.load %arg3[%c0_2, %c0_3, %c0_4] : memref<1x2x128xf32, #tpu.memory_space<vmem>>, vector<1x2x128xf32>
    %2 = arith.addf %0, %1 : vector<1x2x128xf32>
    %c0_5 = arith.constant 0 : index
    %c0_6 = arith.constant 0 : index
    %c0_7 = arith.constant 0 : index
    %3 = vector.load %arg4[%c0_5, %c0_6, %c0_7] : memref<1x2x128xf32, #tpu.memory_space<vmem>>, vector<1x2x128xf32>
    tpu.vector_store %arg4[%c0_5, %c0_6, %c0_7], %2 {strides = array<i32>} : memref<1x2x128xf32, #tpu.memory_space<vmem>>, vector<1x2x128xf32>,
    return
  }
  func.func @transform_0(%arg0: i32, %arg1: i32) -> (i32, i32, i32) {
    %c0_i32 = arith.constant 0 : i32
    %c0_i32_0 = arith.constant 0 : i32
    return %arg1, %arg0, %c0_i32 : i32, i32, i32
  }
  func.func @transform_1(%arg0: i32, %arg1: i32) -> (i32, i32, i32) {
    %c0_i32 = arith.constant 0 : i32
    %c0_i32_0 = arith.constant 0 : i32
    %c0_i32_1 = arith.constant 0 : i32
    %c0_i32_2 = arith.constant 0 : i32
    return %c0_i32, %c0_i32_0, %c0_i32_1 : i32, i32, i32
  }
  func.func @transform_2(%arg0: i32, %arg1: i32) -> (i32, i32, i32) {
    %c0_i32 = arith.constant 0 : i32
    %c0_i32_0 = arith.constant 0 : i32
    return %arg1, %arg0, %c0_i32 : i32, i32, i32
  }
}

</mosaic_0001>

<llo_original>
// kernel: tpu_custom_call.1
$region0: #{tpu_custom_call.1}
  #allocation0 [shape = 'u32[]', space=smem, size = 0x4, offset = 0x4, fixed_abs, tag = 'smem constant byte address 0x4 - core index']
  #allocation1 [shape = 'u32[144,128]{1,0:T(1,128)}', space=vmem, size = 0x12000, scoped, tag = 'internal scratch']
  %s0 = inlined_call_operand.hbm [shape: f32[2,2,128], index: 0, kind: input, shape index: {}]
  %s1 = inlined_call_operand.hbm [shape: f32[1,2,128], index: 1, kind: input, shape index: {}]
  %s2 = inlined_call_operand.hbm [shape: f32[2,2,128], index: 2, kind: output, shape index: {}]
  %s3 = sld [smem:[#allocation0]]
  $region49: #{tpu_custom_call.1} parent=0
    _
  %s5 = ssub.s32 1, %s3
  %s6 = scalar_select 0, %s5, %s3
  $region1: #{tpu_custom_call.1} parent=0
    #allocation2 [shape = 'u8[2048]{0}', space=vmem, size = 0x800, scoped, tag = 'input window, operand 0']
    #allocation3 [shape = 's32[2]{0}', space=sflag, size = 0x8, scoped, tag = 'scoped memory for tpu_custom_call.1']
    #allocation4 [shape = 's32[2]{0}', space=sflag, size = 0x8, scoped, tag = 'scoped memory for tpu_custom_call.1']
    #allocation5 [shape = 'u8[1024]{0}', space=vmem, size = 0x400, scoped, tag = 'input window, operand 1, single buffered']
    #allocation6 [shape = 's32[1]{0}', space=sflag, size = 0x4, scoped, tag = 'scoped memory for tpu_custom_call.1']
    #allocation7 [shape = 'u8[2048]{0}', space=vmem, size = 0x800, scoped, tag = 'output window, operand 0']
    %7 = vsyncpa [#allocation3], 0
    %s8 = scalar_lea.sflag [#allocation3], 1
    %9 = vsyncpa %s8, 0
    %10 = vsyncpa [#allocation6], 0
    %11 = vsyncpa [#allocation4], 0
    %s12 = scalar_lea.sflag [#allocation4], 1
    %13 = vsyncpa %s12, 0
    loop: start=0, step=1, limit=4
    $region2: #{tpu_custom_call.1} parent=1 // loop_pre_header
      _
    $region3: #{tpu_custom_call.1} parent=1 // loop_header
      %s15 = sphi 0, %s19
      %p16 = scmp.ge.s32.totalorder %s15, 4
      %s22 = sphi 0, %s34
      %s23 = sphi 0, %s30
      %s24 = sphi 0, %s22
      %s25 = sphi 0, %s23
      %s26 = sphi 0, %s24
      %s27 = sphi 0, %s25
      %s39 = sphi 0, %s41
      %s42 = sphi 0, %s39
      %s43 = sphi 0, %s42
      %s59 = sphi 0, %s43
      %s63 = sphi 0, %s63
      %s65 = sphi 0, %s63
      %s66 = sphi 0, %s65
      %s80 = sphi 0, %s66
      %s88 = sphi 0, %s90
      %s91 = sphi 0, %s88
      %s92 = sphi 0, %s91
      %s108 = sphi 0, %s92
    $region4: #{tpu_custom_call.1} parent=1 // loop_header_branch
      %18 = sbr.rel (%p16) target = $region8
    $region5: #{tpu_custom_call.1} parent=1 // loop_body
      %s20 = ssub.s32 %s15, 1
      %s21 = ssub.s32 %s15, 2
      %s28 = sadd.s32 1, %s23
      %p29 = scmp.ge.s32.totalorder %s28, 2
      %s30 = scalar_select %p29, 0, %s28
      %s31 = sadd.s32 1, %s22
      %s32 = scalar_select %p29, %s31, %s22
      %p33 = scmp.ge.s32.totalorder %s32, 1
      %s34 = scalar_select %p33, 0, %s32
      %s35 = ssub.s32 %s23, %s30
      %s36 = ssub.s32 %s22, %s34
      %s37 = sor.u32 %s35, %s36
      %p38 = scmp.eq.s32.totalorder %s37, 0
      %s40 = sadd.s32 %s39, 1
      %s41 = scalar_select %p38, %s39, %s40
      %p44 = pneg %p38
      %p45 = scmp.eq.s32.totalorder %s15, 1
      %p46 = por %p44, %p45
      %p47 = scmp.ne.s32.totalorder %s39, %s42
      %p48 = scmp.eq.s32.totalorder %s15, 0
      %p49 = por %p47, %p48
      %p50 = scmp.ne.s32.totalorder %s39, %s42
      %p51 = scmp.eq.s32.totalorder %s20, 1
      %p52 = por %p50, %p51
      %p53 = scmp.ne.s32.totalorder %s42, %s43
      %p54 = scmp.eq.s32.totalorder %s20, 0
      %p55 = por %p53, %p54
      %p56 = scmp.ne.s32.totalorder %s42, %s43
      %p57 = scmp.eq.s32.totalorder %s21, 1
      %p58 = por %p56, %p57
      %p60 = scmp.ne.s32.totalorder %s43, %s59
      %p61 = scmp.eq.s32.totalorder %s21, 0
      %p62 = por %p60, %p61
      %s64 = sadd.s32 %s63, 1
      %p67 = scmp.eq.s32.totalorder %s15, 1
      %p68 = scmp.ne.s32.totalorder %s63, %s65
      %p69 = scmp.eq.s32.totalorder %s15, 0
      %p70 = por %p68, %p69
      %p71 = scmp.ne.s32.totalorder %s63, %s65
      %p72 = scmp.eq.s32.totalorder %s20, 1
      %p73 = por %p71, %p72
      %p74 = scmp.ne.s32.totalorder %s65, %s66
      %p75 = scmp.eq.s32.totalorder %s20, 0
      %p76 = por %p74, %p75
      %p77 = scmp.ne.s32.totalorder %s65, %s66
      %p78 = scmp.eq.s32.totalorder %s21, 1
      %p79 = por %p77, %p78
      %p81 = scmp.ne.s32.totalorder %s66, %s80
      %p82 = scmp.eq.s32.totalorder %s21, 0
      %p83 = por %p81, %p82
      %s84 = ssub.s32 %s23, %s30
      %s85 = ssub.s32 %s22, %s34
      %s86 = sor.u32 %s84, %s85
      %p87 = scmp.eq.s32.totalorder %s86, 0
      %s89 = sadd.s32 %s88, 1
      %s90 = scalar_select %p87, %s88, %s89
      %p93 = pneg %p87
      %p94 = scmp.eq.s32.totalorder %s15, 1
      %p95 = por %p93, %p94
      %p96 = scmp.ne.s32.totalorder %s88, %s91
      %p97 = scmp.eq.s32.totalorder %s15, 0
      %p98 = por %p96, %p97
      %p99 = scmp.ne.s32.totalorder %s88, %s91
      %p100 = scmp.eq.s32.totalorder %s20, 1
      %p101 = por %p99, %p100
      %p102 = scmp.ne.s32.totalorder %s91, %s92
      %p103 = scmp.eq.s32.totalorder %s20, 0
      %p104 = por %p102, %p103
      %p105 = scmp.ne.s32.totalorder %s91, %s92
      %p106 = scmp.eq.s32.totalorder %s21, 1
      %p107 = por %p105, %p106
      %p109 = scmp.ne.s32.totalorder %s92, %s108
      %p110 = scmp.eq.s32.totalorder %s21, 0
      %p111 = por %p109, %p110
      %p112 = scmp.le.s32.totalorder 1, %s15
      %p113 = scmp.lt.s32.totalorder %s15, 3
      %p114 = pnand %p112, %p113
      %p115 = pneg %p114
      // Predicated region
      $region9: #{tpu_custom_call.1} parent=5 // pred_check
        _
      $region10: #{tpu_custom_call.1} parent=5 // pred_check_branch
        %117 = sbr.rel (%p114) target = $region12
      $region11: #{tpu_custom_call.1} parent=5 // pred_region
        %s118 = ssub.s32 %s15, 1
        // Predicated region
        $region13: #{tpu_custom_call.1} parent=11 // pred_check
          %p119 = pneg %p76
        $region14: #{tpu_custom_call.1} parent=11 // pred_check_branch
          %121 = sbr.rel (%p119) target = $region16
        $region15: #{tpu_custom_call.1} parent=11 // pred_region
          %s123 = ssub.s32 32, 32
          %124 = vsyncadd [#allocation6], %s123
          %s126 = sshll.u32 [#allocation5], 4
          %s127 = int_to_ptr.vmem [resolvable:$true] %s126
          %129 = dma.hbm_to_vmem [thread:$0]  %s1, 32, %s127, [#allocation6]
        $region16: #{tpu_custom_call.1} parent=11 // pred_fallthru
          _
      $region12: #{tpu_custom_call.1} parent=5 // pred_fallthru
        _
      %p130 = scmp.lt.s32.totalorder %s15, 2
      // Predicated region
      $region17: #{tpu_custom_call.1} parent=5 // pred_check
        %p131 = pneg %p130
      $region18: #{tpu_custom_call.1} parent=5 // pred_check_branch
        %133 = sbr.rel (%p131) target = $region20
      $region19: #{tpu_custom_call.1} parent=5 // pred_region
        // Predicated region
        $region21: #{tpu_custom_call.1} parent=19 // pred_check
          %p134 = pneg %p49
        $region22: #{tpu_custom_call.1} parent=19 // pred_check_branch
          %136 = sbr.rel (%p134) target = $region24
        $region23: #{tpu_custom_call.1} parent=19 // pred_region
          %s137 = sand.u32 %s39, 1
          %s138 = scalar_lea.sflag [#allocation3], %s137
          %s139 = sand.u32 %s39, 1
          %s140 = smul.addr %s139, 2
          %s141 = scalar_lea.vmem [#allocation2], %s140
          %s143 = ssub.s32 32, 32
          %144 = vsyncadd %s138, %s143
          %s145 = sadd.s32 %s22, %s23
          %s146 = smul.addr %s145, 32
          %s147 = scalar_lea.hbm %s0, %s146
          %s149 = sshll.u32 %s141, 4
          %s150 = int_to_ptr.vmem [resolvable:$true] %s149
          %152 = dma.hbm_to_vmem [thread:$0]  %s147, 32, %s150, %s138
        $region24: #{tpu_custom_call.1} parent=19 // pred_fallthru
          _
      $region20: #{tpu_custom_call.1} parent=5 // pred_fallthru
        _
      %p153 = scmp.le.s32.totalorder 1, %s15
      %p154 = scmp.lt.s32.totalorder %s15, 3
      %p155 = pnand %p153, %p154
      %p156 = pneg %p155
      // Predicated region
      $region25: #{tpu_custom_call.1} parent=5 // pred_check
        _
      $region26: #{tpu_custom_call.1} parent=5 // pred_check_branch
        %158 = sbr.rel (%p155) target = $region28
      $region27: #{tpu_custom_call.1} parent=5 // pred_region
        %s159 = ssub.s32 %s15, 1
        %s160 = sand.u32 %s42, 1
        %s161 = scalar_lea.sflag [#allocation3], %s160
        %s162 = sand.u32 %s42, 1
        %s163 = smul.addr %s162, 2
        %s164 = scalar_lea.vmem [#allocation2], %s163
        // Predicated region
        $region29: #{tpu_custom_call.1} parent=27 // pred_check
          %p165 = pneg %p55
        $region30: #{tpu_custom_call.1} parent=27 // pred_check_branch
          %167 = sbr.rel (%p165) target = $region32
        $region31: #{tpu_custom_call.1} parent=27 // pred_region
          %168 = dma.done %s161, 32
        $region32: #{tpu_custom_call.1} parent=27 // pred_fallthru
          _
        // Predicated region
        $region33: #{tpu_custom_call.1} parent=27 // pred_check
          %p169 = pneg %p76
        $region34: #{tpu_custom_call.1} parent=27 // pred_check_branch
          %171 = sbr.rel (%p169) target = $region36
        $region35: #{tpu_custom_call.1} parent=27 // pred_region
          %172 = dma.done [#allocation6], 32
        $region36: #{tpu_custom_call.1} parent=27 // pred_fallthru
          _
        %s173 = sand.u32 %s42, 1
        %s174 = scalar_lea.sflag [#allocation3], %s173
        %s175 = sand.u32 %s42, 1
        %s176 = smul.addr %s175, 2
        %s177 = scalar_lea.vmem [#allocation2], %s176
        %p178 = pneg %p55
        %p179 = pneg %p52
        %p180 = pneg %p76
        %p181 = pneg %p73
        %p182 = pneg %p104
        %p183 = pneg %p101
        %s184 = sand.u32 %s91, 1
        %s185 = scalar_lea.sflag [#allocation4], %s184
        %s186 = sand.u32 %s91, 1
        %s187 = smul.addr %s186, 2
        %s188 = scalar_lea.vmem [#allocation7], %s187
        %v189 = vld [vmem:[%s164] sm:$0x3]
        %v190 = vld [vmem:[#allocation5] sm:$0x3]
        %v191 = vadd.f32 %v189, %v190
        %192 = vst [vmem:[%s188] sm:$0x3] %v191
        %s193 = sand.u32 %s91, 1
        %s194 = scalar_lea.sflag [#allocation4], %s193
        %s195 = sand.u32 %s91, 1
        %s196 = smul.addr %s195, 2
        %s197 = scalar_lea.vmem [#allocation7], %s196
        // Predicated region
        $region37: #{tpu_custom_call.1} parent=27 // pred_check
          %p198 = pneg %p101
        $region38: #{tpu_custom_call.1} parent=27 // pred_check_branch
          %200 = sbr.rel (%p198) target = $region40
        $region39: #{tpu_custom_call.1} parent=27 // pred_region
          %s202 = ssub.s32 32, 32
          %203 = vsyncadd %s194, %s202
          %s204 = sadd.s32 %s24, %s25
          %s205 = smul.addr %s204, 32
          %s206 = scalar_lea.hbm %s2, %s205
          %s208 = sshll.u32 %s197, 4
          %s209 = int_to_ptr.vmem [resolvable:$true] %s208
          %211 = dma.vmem_to_hbm [thread:$0]  %s209, 32, %s206, %s194
        $region40: #{tpu_custom_call.1} parent=27 // pred_fallthru
          _
      $region28: #{tpu_custom_call.1} parent=5 // pred_fallthru
        _
      %p212 = scmp.le.s32.totalorder 2, %s15
      // Predicated region
      $region41: #{tpu_custom_call.1} parent=5 // pred_check
        %p213 = pneg %p212
      $region42: #{tpu_custom_call.1} parent=5 // pred_check_branch
        %215 = sbr.rel (%p213) target = $region44
      $region43: #{tpu_custom_call.1} parent=5 // pred_region
        %s216 = ssub.s32 %s15, 2
        // Predicated region
        $region45: #{tpu_custom_call.1} parent=43 // pred_check
          %p217 = pneg %p107
        $region46: #{tpu_custom_call.1} parent=43 // pred_check_branch
          %219 = sbr.rel (%p217) target = $region48
        $region47: #{tpu_custom_call.1} parent=43 // pred_region
          %s220 = sand.u32 %s92, 1
          %s221 = scalar_lea.sflag [#allocation4], %s220
          %s222 = sand.u32 %s92, 1
          %s223 = smul.addr %s222, 2
          %s224 = scalar_lea.vmem [#allocation7], %s223
          %225 = dma.done %s221, 32
        $region48: #{tpu_custom_call.1} parent=43 // pred_fallthru
          _
      $region44: #{tpu_custom_call.1} parent=5 // pred_fallthru
        _
    $region6: #{tpu_custom_call.1} parent=1 // loop_footer
      %s19 = sadd.s32 1, %s15
    $region7: #{tpu_custom_call.1} parent=1 // loop_footer_branch
      %14 = sbr.rel target = $region3
    $region8: #{tpu_custom_call.1} parent=1 // loop_exit
      _
    %226 = vsyncpa [#allocation3], 1
    %s227 = scalar_lea.sflag [#allocation3], 1
    %228 = vsyncpa %s227, 1
    %229 = vsyncpa [#allocation6], 1
    %230 = vsyncpa [#allocation4], 1
    %s231 = scalar_lea.sflag [#allocation4], 1
    %232 = vsyncpa %s231, 1

</llo_original>
